<compile_context>
chip_gen: v6e
topology: v6e:2x2x1
jax: 0.10.0
libtpu: 0.0.40
codegen_flags: <defaults>
</compile_context>

<pallas_src>
import numpy as np
import jax
import jax.numpy as jnp
from jax.experimental import pallas as pl
from jax.experimental.pallas import tpu as pltpu


def build_laplacian(nv: int, faces: np.ndarray) -> np.ndarray:
    """Same construction as the PyTorch module's __init__ (numpy glue)."""
    laplacian = np.zeros([nv, nv], dtype=np.float32)
    laplacian[faces[:, 0], faces[:, 1]] = -1
    laplacian[faces[:, 1], faces[:, 0]] = -1
    laplacian[faces[:, 1], faces[:, 2]] = -1
    laplacian[faces[:, 2], faces[:, 1]] = -1
    laplacian[faces[:, 2], faces[:, 0]] = -1
    laplacian[faces[:, 0], faces[:, 2]] = -1
    r, c = np.diag_indices(laplacian.shape[0])
    laplacian[r, c] = -laplacian.sum(1)
    for i in range(nv):
        laplacian[i, :] /= laplacian[i, i]
    return laplacian


def _laplacian_loss_kernel(l_ref, xt_ref, o_ref, y_acc):
    # l_ref : [blk, blk]  L tile (rows: output verts of tile j, cols: source verts of tile k)
    # xt_ref: [blk, BD]   x^T tile (rows: source verts of tile k, cols: (batch, coord))
    # o_ref : [1, BD]     per-j partial sum of y^2 over this tile's output vertices
    # y_acc : [blk, BD]   running y^T = L @ x^T for output tile j
    k = pl.program_id(1)
    nk = pl.num_programs(1)

    # L streams through the MXU as the LHS (activations); the tiny x^T tile is
    # the stationary RHS, so there is no per-L-tile weight-load stall.
    prod = jnp.dot(l_ref[...], xt_ref[...], preferred_element_type=jnp.float32)

    @pl.when(k == 0)
    def _():
        y_acc[...] = prod            # direct store: skip zero-init write+readback

    @pl.when(k > 0)
    def _():
        y_acc[...] += prod

    @pl.when(k == nk - 1)
    def _():
        y = y_acc[...]
        # Partial sum of squares for this output-vertex tile; per-batch
        # grouping and the 1/(nv*D) normalization happen in the wrapper.
        o_ref[...] = jnp.sum(y * y, axis=0, keepdims=True)


class LaplacianLoss:
    """JAX/Pallas port of the PyTorch LaplacianLoss module."""

    def __init__(self, vertex: np.ndarray, faces: np.ndarray, average: bool = False,
                 *, compute_dtype=jnp.bfloat16, block_size: int = 1024):
        self.nv = vertex.shape[0]
        self.nf = faces.shape[0]
        self.average = average
        self.compute_dtype = compute_dtype

        assert block_size % 128 == 0, "block_size must be a multiple of 128"
        # Tile (multiple of 128) and padded vertex count; padded rows/cols of
        # L (and x) are zero, so they contribute exactly 0 to the loss.
        self.block = min(block_size, pl.cdiv(self.nv, 128) * 128)
        self.nvp = pl.cdiv(self.nv, self.block) * self.block
        self.n_tiles = self.nvp // self.block

        lap = build_laplacian(self.nv, faces)
        self.laplacian_np = lap      # exact f32 copy stays host-side (no HBM dup)

        # Pre-tile L into a contiguous [nt, nt, blk, blk] layout so each grid
        # step's L fetch is one contiguous DMA, and cast to the streaming dtype.
        nt, blk = self.n_tiles, self.block
        lap_p = np.zeros((self.nvp, self.nvp), dtype=np.float32)
        lap_p[: self.nv, : self.nv] = lap
        lap_tiled = np.ascontiguousarray(
            lap_p.reshape(nt, blk, nt, blk).transpose(0, 2, 1, 3))
        self.lap_tiled = jnp.asarray(lap_tiled, dtype=compute_dtype)

    def __call__(self, x: jax.Array) -> jax.Array:
        B, nv, D = x.shape
        assert nv == self.nv
        BD = B * D
        blk, nvp, nt = self.block, self.nvp, self.n_tiles

        # x^T slab: [nvp, B*D]; source vertices on the sublane axis, (batch,
        # coord) on lanes, column index = b*D + d.
        x_t = jnp.transpose(x, (1, 0, 2)).reshape(nv, BD).astype(self.compute_dtype)
        if nvp != nv:
            x_t = jnp.pad(x_t, ((0, nvp - nv), (0, 0)))

        itemsize = jnp.dtype(self.compute_dtype).itemsize
        # Double-buffered L + x tiles, the f32 y accumulator and the output
        # row; clamp well under v7x's 64 MiB physical VMEM.
        working = (2 * blk * blk * itemsize + 2 * blk * BD * itemsize
                   + blk * BD * 4 + 2 * BD * 4)
        vmem_limit = int(min(max(2 * working, 16 << 20), 48 << 20))

        cost = pl.CostEstimate(
            flops=2 * BD * nv * nv,
            transcendentals=0,
            bytes_accessed=itemsize * (nvp * nvp + nt * nvp * BD) + 4 * nt * BD)

        partials = pl.pallas_call(
            _laplacian_loss_kernel,
            out_shape=jax.ShapeDtypeStruct((nt, 1, BD), jnp.float32),
            grid_spec=pltpu.PrefetchScalarGridSpec(
                num_scalar_prefetch=0,
                grid=(nt, nt),            # (output-vertex tile j, contraction tile k)
                in_specs=[
                    # Contiguous pre-tiled L: one contiguous DMA per grid step.
                    pl.BlockSpec((None, None, blk, blk), lambda j, k: (j, k, 0, 0)),
                    pl.BlockSpec((blk, BD), lambda j, k: (k, 0)),
                ],
                out_specs=pl.BlockSpec((None, 1, BD), lambda j, k: (j, 0, 0)),
                scratch_shapes=[pltpu.VMEM((blk, BD), jnp.float32)],
            ),
            compiler_params=pltpu.CompilerParams(
                # The j axis has no cross-tile state (per-j partial outputs),
                # so it is safe to shard across v7x's two TensorCores; k is
                # the reduction and stays sequential.
                dimension_semantics=("parallel", "arbitrary"),
                vmem_limit_bytes=vmem_limit),
            cost_estimate=cost,
        )(self.lap_tiled, x_t)

        # Per-batch grouping + mean over (nv, D); padded vertices contribute 0.
        out = partials.reshape(nt, B, D).sum(axis=(0, 2)) / (nv * D)
        if self.average:
            return out.sum() / B
        return out


if __name__ == "__main__":
    # Small deterministic problem: 200 vertices (pads to 256), 3D coords, B=2.
    # block_size=128 -> grid (2, 2): exercises init / K-accumulate / finalize
    # and multiple parallel j tiles.
    nv, D, B = 200, 3, 2

    # Deterministic triangle-strip faces: every vertex appears in >= 1 face,
    # so all laplacian diagonal entries are nonzero (as the module assumes).
    faces = np.stack(
        [np.arange(nv - 2), np.arange(1, nv - 1), np.arange(2, nv)], axis=1
    ).astype(np.int64)
    vertex = np.zeros((nv, 3), dtype=np.float32)

    key = jax.random.PRNGKey(0)
    x = jax.random.normal(key, (B, nv, D), dtype=jnp.float32)

    # Pure-JAX reference (same math as the PyTorch forward), f32.
    lap_f32 = jnp.asarray(build_laplacian(nv, faces))
    y_ref = jnp.einsum("vw,bwd->bvd", lap_f32, x)
    ref = jnp.mean(y_ref ** 2, axis=(1, 2))

    # Exact f32 streaming path, per-batch loss (tight tolerance).
    loss_f32 = LaplacianLoss(vertex, faces, average=False,
                             compute_dtype=jnp.float32, block_size=128)
    out = jax.block_until_ready(loss_f32(x))
    np.testing.assert_allclose(np.asarray(out), np.asarray(ref),
                               rtol=1e-5, atol=1e-6)

    # average=True path (f32).
    loss_avg = LaplacianLoss(vertex, faces, average=True,
                             compute_dtype=jnp.float32, block_size=128)
    out_avg = jax.block_until_ready(loss_avg(x))
    np.testing.assert_allclose(np.asarray(out_avg), float(ref.sum() / B),
                               rtol=1e-5, atol=1e-6)

    # Default bf16 streaming of L / x (halves HBM bytes on the memory-bound
    # L stream).  MXU accumulation is f32, so error is input quantization
    # only (~0.4% on the -1/deg entries of L and on x).
    loss_bf16 = LaplacianLoss(vertex, faces, average=False, block_size=128)
    out_bf16 = jax.block_until_ready(loss_bf16(x))
    np.testing.assert_allclose(np.asarray(out_bf16), np.asarray(ref),
                               rtol=5e-2, atol=1e-3)

    print("KERNEL_OK")
</pallas_src>

<mosaic_0001>
module attributes {stable_mosaic.version = 11 : i64} {
  func.func @_laplacian_loss_kernel(%arg0: i32, %arg1: i32, %arg2: memref<1x1x128x128xf32, #tpu.memory_space<vmem>>, %arg3: memref<128x6xf32, #tpu.memory_space<vmem>>, %arg4: memref<1x1x6xf32, #tpu.memory_space<vmem>>, %arg5: memref<128x6xf32, #tpu.memory_space<vmem>>) attributes {dimension_semantics = [#tpu.dimension_semantics<parallel>, #tpu.dimension_semantics<arbitrary>], iteration_bounds = array<i64: 2, 2>, scalar_prefetch = 0 : i64, scratch_operands = 1 : i64, tpu.core_type = #tpu.core_type<tc>, window_params = [{transform_indices = @transform_0, window_bounds = array<i64: 1, 1, 128, 128>}, {transform_indices = @transform_1, window_bounds = array<i64: 128, 6>}, {transform_indices = @transform_2, window_bounds = array<i64: 1, 1, 6>}]} {
    %c0 = arith.constant 0 : index
    %c0_0 = arith.constant 0 : index
    %c0_1 = arith.constant 0 : index
    %c0_2 = arith.constant 0 : index
    %0 = vector.load %arg2[%c0, %c0_0, %c0_1, %c0_2] : memref<1x1x128x128xf32, #tpu.memory_space<vmem>>, vector<1x1x128x128xf32>
    %1 = vector.shape_cast %0 : vector<1x1x128x128xf32> to vector<128x128xf32>
    %c0_3 = arith.constant 0 : index
    %c0_4 = arith.constant 0 : index
    %2 = vector.load %arg3[%c0_3, %c0_4] : memref<128x6xf32, #tpu.memory_space<vmem>>, vector<128x6xf32>
    %cst = arith.constant dense<0.000000e+00> : vector<128x6xf32>
    %3 = tpu.matmul %1, %2, %cst {dimension_numbers = #tpu.dot_dimension_numbers<[1], [0], [0], [1], [0, 0, 1, 1], [], []>} : vector<128x128xf32>, vector<128x6xf32>, vector<128x6xf32> -> vector<128x6xf32>
    %c0_i32 = arith.constant 0 : i32
    %4 = arith.cmpi eq, %arg1, %c0_i32 : i32
    %5 = arith.extui %4 : i1 to i32
    %c0_i32_5 = arith.constant 0 : i32
    %6 = arith.cmpi ne, %5, %c0_i32_5 : i32
    scf.if %6 {
      %c0_9 = arith.constant 0 : index
      %c0_10 = arith.constant 0 : index
      %13 = vector.load %arg5[%c0_9, %c0_10] : memref<128x6xf32, #tpu.memory_space<vmem>>, vector<128x6xf32>
      tpu.vector_store %arg5[%c0_9, %c0_10], %3 {strides = array<i32>} : memref<128x6xf32, #tpu.memory_space<vmem>>, vector<128x6xf32>,
    } else {
    }
    %c0_i32_6 = arith.constant 0 : i32
    %7 = arith.cmpi sgt, %arg1, %c0_i32_6 : i32
    %8 = arith.extui %7 : i1 to i32
    %c0_i32_7 = arith.constant 0 : i32
    %9 = arith.cmpi ne, %8, %c0_i32_7 : i32
    scf.if %9 {
      %c0_9 = arith.constant 0 : index
      %c0_10 = arith.constant 0 : index
      %13 = vector.load %arg5[%c0_9, %c0_10] : memref<128x6xf32, #tpu.memory_space<vmem>>, vector<128x6xf32>
      %14 = arith.addf %13, %3 : vector<128x6xf32>
      %c0_11 = arith.constant 0 : index
      %c0_12 = arith.constant 0 : index
      %15 = vector.load %arg5[%c0_11, %c0_12] : memref<128x6xf32, #tpu.memory_space<vmem>>, vector<128x6xf32>
      tpu.vector_store %arg5[%c0_11, %c0_12], %14 {strides = array<i32>} : memref<128x6xf32, #tpu.memory_space<vmem>>, vector<128x6xf32>,
    } else {
    }
    %c1_i32 = arith.constant 1 : i32
    %10 = arith.cmpi eq, %arg1, %c1_i32 : i32
    %11 = arith.extui %10 : i1 to i32
    %c0_i32_8 = arith.constant 0 : i32
    %12 = arith.cmpi ne, %11, %c0_i32_8 : i32
    scf.if %12 {
      %c0_9 = arith.constant 0 : index
      %c0_10 = arith.constant 0 : index
      %13 = vector.load %arg5[%c0_9, %c0_10] : memref<128x6xf32, #tpu.memory_space<vmem>>, vector<128x6xf32>
      %14 = arith.mulf %13, %13 : vector<128x6xf32>
      %cst_11 = arith.constant dense<0.000000e+00> : vector<6xf32>
      %15 = vector.multi_reduction <add>, %14, %cst_11 [0] : vector<128x6xf32> to vector<6xf32>
      %16 = vector.shape_cast %15 : vector<6xf32> to vector<1x6xf32>
      %c0_12 = arith.constant 0 : index
      %c0_13 = arith.constant 0 : index
      %c0_14 = arith.constant 0 : index
      %17 = vector.load %arg4[%c0_12, %c0_13, %c0_14] : memref<1x1x6xf32, #tpu.memory_space<vmem>>, vector<1x1x6xf32>
      %18 = vector.shape_cast %17 : vector<1x1x6xf32> to vector<1x6xf32>
      %19 = vector.shape_cast %16 : vector<1x6xf32> to vector<1x1x6xf32>
      tpu.vector_store %arg4[%c0_12, %c0_13, %c0_14], %19 {strides = array<i32>} : memref<1x1x6xf32, #tpu.memory_space<vmem>>, vector<1x1x6xf32>,
    } else {
    }
    return
  }
  func.func @transform_0(%arg0: i32, %arg1: i32) -> (i32, i32, i32, i32) {
    %c0_i32 = arith.constant 0 : i32
    %c0_i32_0 = arith.constant 0 : i32
    %c0_i32_1 = arith.constant 0 : i32
    return %arg0, %arg1, %c0_i32, %c0_i32_0 : i32, i32, i32, i32
  }
  func.func @transform_1(%arg0: i32, %arg1: i32) -> (i32, i32) {
    %c0_i32 = arith.constant 0 : i32
    %c0_i32_0 = arith.constant 0 : i32
    return %arg1, %c0_i32 : i32, i32
  }
  func.func @transform_2(%arg0: i32, %arg1: i32) -> (i32, i32, i32) {
    %c0_i32 = arith.constant 0 : i32
    %c0_i32_0 = arith.constant 0 : i32
    %c0_i32_1 = arith.constant 0 : i32
    return %arg0, %c0_i32, %c0_i32_0 : i32, i32, i32
  }
}

</mosaic_0001>

<llo_original>
// kernel: tpu_custom_call.1
$region0: #{tpu_custom_call.1}
  #allocation0 [shape = 'u32[]', space=smem, size = 0x4, offset = 0x4, fixed_abs, tag = 'smem constant byte address 0x4 - core index']
  #allocation1 [shape = 'u32[144,128]{1,0:T(1,128)}', space=vmem, size = 0x12000, scoped, tag = 'internal scratch']
  #allocation2 [shape = 'f32[128,6]{1,0:T(8,128)}', space=vmem, size = 0x10000, scoped, tag = 'scratch operand']
  %s0 = inlined_call_operand.hbm [shape: f32[2,2,128,128], index: 0, kind: input, shape index: {}]
  %s1 = inlined_call_operand.vmem [shape: f32[256,6], index: 1, kind: input, shape index: {}]
  %s2 = inlined_call_operand.hbm [shape: f32[2,1,6], index: 2, kind: output, shape index: {}]
  %s3 = sld [smem:[#allocation0]]
  $region57: #{tpu_custom_call.1} parent=0
    _
  %s5 = ssub.s32 1, %s3
  %s6 = scalar_select 0, %s5, %s3
  $region1: #{tpu_custom_call.1} parent=0
    #allocation3 [shape = 'u8[131072]{0}', space=vmem, size = 0x20000, scoped, tag = 'input window, operand 0']
    #allocation4 [shape = 's32[2]{0}', space=sflag, size = 0x8, scoped, tag = 'scoped memory for tpu_custom_call.1']
    #allocation5 [shape = 's32[2]{0}', space=sflag, size = 0x8, scoped, tag = 'scoped memory for tpu_custom_call.1']
    #allocation6 [shape = 'u8[1024]{0}', space=vmem, size = 0x400, scoped, tag = 'output window, operand 0']
    %7 = vsyncpa [#allocation4], 0
    %s8 = scalar_lea.sflag [#allocation4], 1
    %9 = vsyncpa %s8, 0
    %10 = vsyncpa [#allocation5], 0
    %s11 = scalar_lea.sflag [#allocation5], 1
    %12 = vsyncpa %s11, 0
    loop: start=0, step=1, limit=6
    $region2: #{tpu_custom_call.1} parent=1 // loop_pre_header
      _
    $region3: #{tpu_custom_call.1} parent=1 // loop_header
      %s14 = sphi 0, %s18
      %p15 = scmp.ge.s32.totalorder %s14, 6
      %s21 = sphi 0, %s33
      %s22 = sphi 0, %s29
      %s23 = sphi 0, %s21
      %s24 = sphi 0, %s22
      %s25 = sphi 0, %s23
      %s26 = sphi 0, %s24
      %s38 = sphi 0, %s40
      %s41 = sphi 0, %s38
      %s42 = sphi 0, %s41
      %s58 = sphi 0, %s42
      %s64 = sphi 0, %s66
      %s67 = sphi 0, %s64
      %s68 = sphi 0, %s67
      %s84 = sphi 0, %s68
      %s90 = sphi 0, %s92
      %s93 = sphi 0, %s90
      %s94 = sphi 0, %s93
      %s110 = sphi 0, %s94
    $region4: #{tpu_custom_call.1} parent=1 // loop_header_branch
      %17 = sbr.rel (%p15) target = $region8
    $region5: #{tpu_custom_call.1} parent=1 // loop_body
      %s19 = ssub.s32 %s14, 1
      %s20 = ssub.s32 %s14, 2
      %s27 = sadd.s32 1, %s22
      %p28 = scmp.ge.s32.totalorder %s27, 2
      %s29 = scalar_select %p28, 0, %s27
      %s30 = sadd.s32 1, %s21
      %s31 = scalar_select %p28, %s30, %s21
      %p32 = scmp.ge.s32.totalorder %s31, 2
      %s33 = scalar_select %p32, 0, %s31
      %s34 = ssub.s32 %s21, %s33
      %s35 = ssub.s32 %s22, %s29
      %s36 = sor.u32 %s34, %s35
      %p37 = scmp.eq.s32.totalorder %s36, 0
      %s39 = sadd.s32 %s38, 1
      %s40 = scalar_select %p37, %s38, %s39
      %p43 = pneg %p37
      %p44 = scmp.eq.s32.totalorder %s14, 3
      %p45 = por %p43, %p44
      %p46 = scmp.ne.s32.totalorder %s38, %s41
      %p47 = scmp.eq.s32.totalorder %s14, 0
      %p48 = por %p46, %p47
      %p49 = scmp.ne.s32.totalorder %s38, %s41
      %p50 = scmp.eq.s32.totalorder %s19, 3
      %p51 = por %p49, %p50
      %p52 = scmp.ne.s32.totalorder %s41, %s42
      %p53 = scmp.eq.s32.totalorder %s19, 0
      %p54 = por %p52, %p53
      %p55 = scmp.ne.s32.totalorder %s41, %s42
      %p56 = scmp.eq.s32.totalorder %s20, 3
      %p57 = por %p55, %p56
      %p59 = scmp.ne.s32.totalorder %s42, %s58
      %p60 = scmp.eq.s32.totalorder %s20, 0
      %p61 = por %p59, %p60
      %s62 = ssub.s32 %s22, %s29
      %p63 = scmp.eq.s32.totalorder %s62, 0
      %s65 = sadd.s32 %s64, 1
      %s66 = scalar_select %p63, %s64, %s65
      %p69 = pneg %p63
      %p70 = scmp.eq.s32.totalorder %s14, 3
      %p71 = por %p69, %p70
      %p72 = scmp.ne.s32.totalorder %s64, %s67
      %p73 = scmp.eq.s32.totalorder %s14, 0
      %p74 = por %p72, %p73
      %p75 = scmp.ne.s32.totalorder %s64, %s67
      %p76 = scmp.eq.s32.totalorder %s19, 3
      %p77 = por %p75, %p76
      %p78 = scmp.ne.s32.totalorder %s67, %s68
      %p79 = scmp.eq.s32.totalorder %s19, 0
      %p80 = por %p78, %p79
      %p81 = scmp.ne.s32.totalorder %s67, %s68
      %p82 = scmp.eq.s32.totalorder %s20, 3
      %p83 = por %p81, %p82
      %p85 = scmp.ne.s32.totalorder %s68, %s84
      %p86 = scmp.eq.s32.totalorder %s20, 0
      %p87 = por %p85, %p86
      %s88 = ssub.s32 %s21, %s33
      %p89 = scmp.eq.s32.totalorder %s88, 0
      %s91 = sadd.s32 %s90, 1
      %s92 = scalar_select %p89, %s90, %s91
      %p95 = pneg %p89
      %p96 = scmp.eq.s32.totalorder %s14, 3
      %p97 = por %p95, %p96
      %p98 = scmp.ne.s32.totalorder %s90, %s93
      %p99 = scmp.eq.s32.totalorder %s14, 0
      %p100 = por %p98, %p99
      %p101 = scmp.ne.s32.totalorder %s90, %s93
      %p102 = scmp.eq.s32.totalorder %s19, 3
      %p103 = por %p101, %p102
      %p104 = scmp.ne.s32.totalorder %s93, %s94
      %p105 = scmp.eq.s32.totalorder %s19, 0
      %p106 = por %p104, %p105
      %p107 = scmp.ne.s32.totalorder %s93, %s94
      %p108 = scmp.eq.s32.totalorder %s20, 3
      %p109 = por %p107, %p108
      %p111 = scmp.ne.s32.totalorder %s94, %s110
      %p112 = scmp.eq.s32.totalorder %s20, 0
      %p113 = por %p111, %p112
      %p114 = scmp.le.s32.totalorder 1, %s14
      %p115 = scmp.lt.s32.totalorder %s14, 5
      %p116 = pnand %p114, %p115
      %p117 = pneg %p116
      // Predicated region
      $region9: #{tpu_custom_call.1} parent=5 // pred_check
        _
      $region10: #{tpu_custom_call.1} parent=5 // pred_check_branch
        %119 = sbr.rel (%p116) target = $region12
      $region11: #{tpu_custom_call.1} parent=5 // pred_region
        %s120 = ssub.s32 %s14, 1
      $region12: #{tpu_custom_call.1} parent=5 // pred_fallthru
        _
      %p121 = scmp.lt.s32.totalorder %s14, 4
      // Predicated region
      $region13: #{tpu_custom_call.1} parent=5 // pred_check
        %p122 = pneg %p121
      $region14: #{tpu_custom_call.1} parent=5 // pred_check_branch
        %124 = sbr.rel (%p122) target = $region16
      $region15: #{tpu_custom_call.1} parent=5 // pred_region
        // Predicated region
        $region17: #{tpu_custom_call.1} parent=15 // pred_check
          %p125 = pneg %p48
        $region18: #{tpu_custom_call.1} parent=15 // pred_check_branch
          %127 = sbr.rel (%p125) target = $region20
        $region19: #{tpu_custom_call.1} parent=15 // pred_region
          %s128 = sand.u32 %s38, 1
          %s129 = scalar_lea.sflag [#allocation4], %s128
          %s130 = sand.u32 %s38, 1
          %s131 = smul.addr %s130, 128
          %s132 = scalar_lea.vmem [#allocation3], %s131
          %s134 = ssub.s32 2048, 2048
          %135 = vsyncadd %s129, %s134
          %s136 = smul.addr %s22, 16
          %s137 = smul.addr %s21, 32
          %s138 = sadd.s32 %s136, %s137
          %s139 = smul.addr %s138, 128
          %s140 = scalar_lea.hbm %s0, %s139
          %s141 = sshll.u32 %s132, 4
          %s142 = int_to_ptr.vmem [resolvable:$true] %s141
          %147 = dma.hbm_to_vmem [thread:$0]  %s140, 2048, %s142, %s129, 128, 128, 8
        $region20: #{tpu_custom_call.1} parent=15 // pred_fallthru
          _
        // Predicated region
        $region21: #{tpu_custom_call.1} parent=15 // pred_check
          %p148 = pneg %p74
        $region22: #{tpu_custom_call.1} parent=15 // pred_check_branch
          %150 = sbr.rel (%p148) target = $region24
        $region23: #{tpu_custom_call.1} parent=15 // pred_region
          %s151 = smul.u32 16, %s22
          %p152 = scmp.lt.s32.totalorder %s151, 31
          %s153 = scalar_select %p152, %s151, 31
          %s154 = smul.addr %s153, 8
          %s155 = scalar_lea.vmem %s1, %s154
          %s156 = smul.u32 16, %s22
        $region24: #{tpu_custom_call.1} parent=15 // pred_fallthru
          _
      $region16: #{tpu_custom_call.1} parent=5 // pred_fallthru
        _
      %p157 = scmp.le.s32.totalorder 1, %s14
      %p158 = scmp.lt.s32.totalorder %s14, 5
      %p159 = pnand %p157, %p158
      %p160 = pneg %p159
      // Predicated region
      $region25: #{tpu_custom_call.1} parent=5 // pred_check
        _
      $region26: #{tpu_custom_call.1} parent=5 // pred_check_branch
        %162 = sbr.rel (%p159) target = $region28
      $region27: #{tpu_custom_call.1} parent=5 // pred_region
        %s163 = ssub.s32 %s14, 1
        %s164 = sand.u32 %s41, 1
        %s165 = scalar_lea.sflag [#allocation4], %s164
        %s166 = sand.u32 %s41, 1
        %s167 = smul.addr %s166, 128
        %s168 = scalar_lea.vmem [#allocation3], %s167
        // Predicated region
        $region29: #{tpu_custom_call.1} parent=27 // pred_check
          %p169 = pneg %p54
        $region30: #{tpu_custom_call.1} parent=27 // pred_check_branch
          %171 = sbr.rel (%p169) target = $region32
        $region31: #{tpu_custom_call.1} parent=27 // pred_region
          %172 = dma.done %s165, 2048
        $region32: #{tpu_custom_call.1} parent=27 // pred_fallthru
          _
        %s173 = sand.u32 %s41, 1
        %s174 = scalar_lea.sflag [#allocation4], %s173
        %s175 = sand.u32 %s41, 1
        %s176 = smul.addr %s175, 128
        %s177 = scalar_lea.vmem [#allocation3], %s176
        %p178 = pneg %p54
        %p179 = pneg %p51
        %s180 = smul.u32 16, %s24
        %p181 = scmp.lt.s32.totalorder %s180, 31
        %s182 = scalar_select %p181, %s180, 31
        %s183 = smul.addr %s182, 8
        %s184 = scalar_lea.vmem %s1, %s183
        %p185 = pneg %p80
        %p186 = pneg %p77
        %p187 = pneg %p106
        %p188 = pneg %p103
        %s189 = sand.u32 %s93, 1
        %s190 = scalar_lea.sflag [#allocation5], %s189
        %s191 = sand.u32 %s93, 1
        %s192 = scalar_lea.vmem [#allocation6], %s191
        %s193 = smul.u32 16, %s24
        %p194 = scmp.lt.s32.totalorder %s193, 31
        %s195 = scalar_select %p194, %s193, 31
        %s196 = smul.addr %s195, 8
        %s197 = scalar_lea.vmem %s1, %s196
        %s198 = smul.u32 16, %s24
        %v199 = vld [vmem:[%s168] sm:$0xff]
        %v200 = vld [vmem:[%s168 + $0x8] sm:$0xff]
        %v201 = vld [vmem:[%s168 + $0x10] sm:$0xff]
        %v202 = vld [vmem:[%s168 + $0x18] sm:$0xff]
        %v203 = vld [vmem:[%s168 + $0x20] sm:$0xff]
        %v204 = vld [vmem:[%s168 + $0x28] sm:$0xff]
        %v205 = vld [vmem:[%s168 + $0x30] sm:$0xff]
        %v206 = vld [vmem:[%s168 + $0x38] sm:$0xff]
        %v207 = vld [vmem:[%s168 + $0x40] sm:$0xff]
        %v208 = vld [vmem:[%s168 + $0x48] sm:$0xff]
        %v209 = vld [vmem:[%s168 + $0x50] sm:$0xff]
        %v210 = vld [vmem:[%s168 + $0x58] sm:$0xff]
        %v211 = vld [vmem:[%s168 + $0x60] sm:$0xff]
        %v212 = vld [vmem:[%s168 + $0x68] sm:$0xff]
        %v213 = vld [vmem:[%s168 + $0x70] sm:$0xff]
        %v214 = vld [vmem:[%s168 + $0x78] sm:$0xff]
        %v215 = vld [vmem:[%s197] sm:$0xff]
        %v216 = vld [vmem:[%s197 + $0x8] sm:$0xff]
        %v217 = vld [vmem:[%s197 + $0x10] sm:$0xff]
        %v218 = vld [vmem:[%s197 + $0x18] sm:$0xff]
        %v219 = vld [vmem:[%s197 + $0x20] sm:$0xff]
        %v220 = vld [vmem:[%s197 + $0x28] sm:$0xff]
        %v221 = vld [vmem:[%s197 + $0x30] sm:$0xff]
        %v222 = vld [vmem:[%s197 + $0x38] sm:$0xff]
        %v223 = vld [vmem:[%s197 + $0x40] sm:$0xff]
        %v224 = vld [vmem:[%s197 + $0x48] sm:$0xff]
        %v225 = vld [vmem:[%s197 + $0x50] sm:$0xff]
        %v226 = vld [vmem:[%s197 + $0x58] sm:$0xff]
        %v227 = vld [vmem:[%s197 + $0x60] sm:$0xff]
        %v228 = vld [vmem:[%s197 + $0x68] sm:$0xff]
        %v229 = vld [vmem:[%s197 + $0x70] sm:$0xff]
        %v230 = vld [vmem:[%s197 + $0x78] sm:$0xff]
        %231 = vmatprep.subr.mxu0 0.0
        %232 = vmatpush1.msra.mxu0 %v230
        %233 = vmatprep.subr.mxu0 0.0
        %234 = vmatpush1.msra.mxu0 %v229
        %235 = vmatprep.subr.mxu0 0.0
        %236 = vmatpush1.msra.mxu0 %v228
        %237 = vmatprep.subr.mxu0 0.0
        %238 = vmatpush1.msra.mxu0 %v227
        %239 = vmatprep.subr.mxu0 0.0
        %240 = vmatpush1.msra.mxu0 %v226
        %241 = vmatprep.subr.mxu0 0.0
        %242 = vmatpush1.msra.mxu0 %v225
        %243 = vmatprep.subr.mxu0 0.0
        %244 = vmatpush1.msra.mxu0 %v224
        %245 = vmatprep.subr.mxu0 0.0
        %246 = vmatpush1.msra.mxu0 %v223
        %247 = vmatprep.subr.mxu0 0.0
        %248 = vmatpush1.msra.mxu0 %v222
        %249 = vmatprep.subr.mxu0 0.0
        %250 = vmatpush1.msra.mxu0 %v221
        %251 = vmatprep.subr.mxu0 0.0
        %252 = vmatpush1.msra.mxu0 %v220
        %253 = vmatprep.subr.mxu0 0.0
        %254 = vmatpush1.msra.mxu0 %v219
        %255 = vmatprep.subr.mxu0 0.0
        %256 = vmatpush1.msra.mxu0 %v218
        %257 = vmatprep.subr.mxu0 0.0
        %258 = vmatpush1.msra.mxu0 %v217
        %259 = vmatprep.subr.mxu0 0.0
        %260 = vmatpush1.msra.mxu0 %v216
        %261 = vmatprep.subr.mxu0 0.0
        %262 = vmatpush1.msra.mxu0 %v215
        %263 = vmatprep.subr.mxu0 0.0
        %264 = vmatpush2.msra.mxu0 0.0
        %265 = vmatprep.subr.mxu0 0.0
        %266 = vmatpush2.msra.mxu0 0.0
        %267 = vmatprep.subr.mxu0 0.0
        %268 = vmatpush2.msra.mxu0 0.0
        %269 = vmatprep.subr.mxu0 0.0
        %270 = vmatpush2.msra.mxu0 0.0
        %271 = vmatprep.subr.mxu0 0.0
        %272 = vmatpush2.msra.mxu0 0.0
        %273 = vmatprep.subr.mxu0 0.0
        %274 = vmatpush2.msra.mxu0 0.0
        %275 = vmatprep.subr.mxu0 0.0
        %276 = vmatpush2.msra.mxu0 0.0
        %277 = vmatprep.subr.mxu0 0.0
        %278 = vmatpush2.msra.mxu0 0.0
        %279 = vmatprep.subr.mxu0 0.0
        %280 = vmatpush2.msra.mxu0 0.0
        %281 = vmatprep.subr.mxu0 0.0
        %282 = vmatpush2.msra.mxu0 0.0
        %283 = vmatprep.subr.mxu0 0.0
        %284 = vmatpush2.msra.mxu0 0.0
        %285 = vmatprep.subr.mxu0 0.0
        %286 = vmatpush2.msra.mxu0 0.0
        %287 = vmatprep.subr.mxu0 0.0
        %288 = vmatpush2.msra.mxu0 0.0
        %289 = vmatprep.subr.mxu0 0.0
        %290 = vmatpush2.msra.mxu0 0.0
        %291 = vmatprep.subr.mxu0 0.0
        %292 = vmatpush2.msra.mxu0 0.0
        %293 = vmatprep.subr.mxu0 0.0
        %294 = vmatpush2.msra.mxu0 0.0
        %295 = vmatprep.mubr.f32.mxu0 0.0
        %296 = vmatmul.mubr.f32.gmra.mxu0 %v199
        %v297 = vpop.f32.mrf.mxu0
        %v298 = vadd.f32 0.0, %v297
        %v299 = vpop.f32.mrf.mxu0
        %300 = vmatprep.mubr.f32.mxu0 0.0
        %301 = vmatmul.mubr.f32.gmra.mxu0 %v200
        %v302 = vpop.f32.mrf.mxu0
        %v303 = vadd.f32 0.0, %v302
        %v304 = vpop.f32.mrf.mxu0
        %305 = vmatprep.mubr.f32.mxu0 0.0
        %306 = vmatmul.mubr.f32.gmra.mxu0 %v201
        %v307 = vpop.f32.mrf.mxu0
        %v308 = vadd.f32 0.0, %v307
        %v309 = vpop.f32.mrf.mxu0
        %310 = vmatprep.mubr.f32.mxu0 0.0
        %311 = vmatmul.mubr.f32.gmra.mxu0 %v202
        %v312 = vpop.f32.mrf.mxu0
        %v313 = vadd.f32 0.0, %v312
        %v314 = vpop.f32.mrf.mxu0
        %315 = vmatprep.mubr.f32.mxu0 0.0
        %316 = vmatmul.mubr.f32.gmra.mxu0 %v203
        %v317 = vpop.f32.mrf.mxu0
        %v318 = vadd.f32 0.0, %v317
        %v319 = vpop.f32.mrf.mxu0
        %320 = vmatprep.mubr.f32.mxu0 0.0
        %321 = vmatmul.mubr.f32.gmra.mxu0 %v204
        %v322 = vpop.f32.mrf.mxu0
        %v323 = vadd.f32 0.0, %v322
        %v324 = vpop.f32.mrf.mxu0
        %325 = vmatprep.mubr.f32.mxu0 0.0
        %326 = vmatmul.mubr.f32.gmra.mxu0 %v205
        %v327 = vpop.f32.mrf.mxu0
        %v328 = vadd.f32 0.0, %v327
        %v329 = vpop.f32.mrf.mxu0
        %330 = vmatprep.mubr.f32.mxu0 0.0
        %331 = vmatmul.mubr.f32.gmra.mxu0 %v206
        %v332 = vpop.f32.mrf.mxu0
        %v333 = vadd.f32 0.0, %v332
        %v334 = vpop.f32.mrf.mxu0
        %335 = vmatprep.mubr.f32.mxu0 0.0
        %336 = vmatmul.mubr.f32.gmra.mxu0 %v207
        %v337 = vpop.f32.mrf.mxu0
        %v338 = vadd.f32 0.0, %v337
        %v339 = vpop.f32.mrf.mxu0
        %340 = vmatprep.mubr.f32.mxu0 0.0
        %341 = vmatmul.mubr.f32.gmra.mxu0 %v208
        %v342 = vpop.f32.mrf.mxu0
        %v343 = vadd.f32 0.0, %v342
        %v344 = vpop.f32.mrf.mxu0
        %345 = vmatprep.mubr.f32.mxu0 0.0
        %346 = vmatmul.mubr.f32.gmra.mxu0 %v209
        %v347 = vpop.f32.mrf.mxu0
        %v348 = vadd.f32 0.0, %v347
        %v349 = vpop.f32.mrf.mxu0
        %350 = vmatprep.mubr.f32.mxu0 0.0
        %351 = vmatmul.mubr.f32.gmra.mxu0 %v210
        %v352 = vpop.f32.mrf.mxu0
        %v353 = vadd.f32 0.0, %v352
        %v354 = vpop.f32.mrf.mxu0
        %355 = vmatprep.mubr.f32.mxu0 0.0
        %356 = vmatmul.mubr.f32.gmra.mxu0 %v211
        %v357 = vpop.f32.mrf.mxu0
        %v358 = vadd.f32 0.0, %v357
        %v359 = vpop.f32.mrf.mxu0
        %360 = vmatprep.mubr.f32.mxu0 0.0
        %361 = vmatmul.mubr.f32.gmra.mxu0 %v212
        %v362 = vpop.f32.mrf.mxu0
        %v363 = vadd.f32 0.0, %v362
        %v364 = vpop.f32.mrf.mxu0
        %365 = vmatprep.mubr.f32.mxu0 0.0
        %366 = vmatmul.mubr.f32.gmra.mxu0 %v213
        %v367 = vpop.f32.mrf.mxu0
        %v368 = vadd.f32 0.0, %v367
        %v369 = vpop.f32.mrf.mxu0
        %370 = vmatprep.mubr.f32.mxu0 0.0
        %371 = vmatmul.mubr.f32.gmra.mxu0 %v214
        %v372 = vpop.f32.mrf.mxu0
        %v373 = vadd.f32 0.0, %v372
        %v374 = vpop.f32.mrf.mxu0
        %375 = vdwg.mxu0
        %p376 = scmp.eq.s32.totalorder %s24, 0
        // Predicated region
        $region33: #{tpu_custom_call.1} parent=27 // pred_check
          %p377 = pneg %p376
        $region34: #{tpu_custom_call.1} parent=27 // pred_check_branch
          %379 = sbr.rel (%p377) target = $region36
        $region35: #{tpu_custom_call.1} parent=27 // pred_region
          %vm380 = vcmask 48128
          %381 = vst.msk [vmem:[#allocation2] sm:$0xff] %vm380, %v298
          %382 = vst.msk [vmem:[#allocation2 + $0x8] sm:$0xff] %vm380, %v303
          %383 = vst.msk [vmem:[#allocation2 + $0x10] sm:$0xff] %vm380, %v308
          %384 = vst.msk [vmem:[#allocation2 + $0x18] sm:$0xff] %vm380, %v313
          %385 = vst.msk [vmem:[#allocation2 + $0x20] sm:$0xff] %vm380, %v318
          %386 = vst.msk [vmem:[#allocation2 + $0x28] sm:$0xff] %vm380, %v323
          %387 = vst.msk [vmem:[#allocation2 + $0x30] sm:$0xff] %vm380, %v328
          %388 = vst.msk [vmem:[#allocation2 + $0x38] sm:$0xff] %vm380, %v333
          %389 = vst.msk [vmem:[#allocation2 + $0x40] sm:$0xff] %vm380, %v338
          %390 = vst.msk [vmem:[#allocation2 + $0x48] sm:$0xff] %vm380, %v343
          %391 = vst.msk [vmem:[#allocation2 + $0x50] sm:$0xff] %vm380, %v348
          %392 = vst.msk [vmem:[#allocation2 + $0x58] sm:$0xff] %vm380, %v353
          %393 = vst.msk [vmem:[#allocation2 + $0x60] sm:$0xff] %vm380, %v358
          %394 = vst.msk [vmem:[#allocation2 + $0x68] sm:$0xff] %vm380, %v363
          %395 = vst.msk [vmem:[#allocation2 + $0x70] sm:$0xff] %vm380, %v368
          %396 = vst.msk [vmem:[#allocation2 + $0x78] sm:$0xff] %vm380, %v373
        $region36: #{tpu_custom_call.1} parent=27 // pred_fallthru
          _
        %p397 = scmp.gt.s32.totalorder %s24, 0
        // Predicated region
        $region37: #{tpu_custom_call.1} parent=27 // pred_check
          %p398 = pneg %p397
        $region38: #{tpu_custom_call.1} parent=27 // pred_check_branch
          %400 = sbr.rel (%p398) target = $region40
        $region39: #{tpu_custom_call.1} parent=27 // pred_region
          %v401 = vld [vmem:[#allocation2] sm:$0xff]
          %v402 = vld [vmem:[#allocation2 + $0x8] sm:$0xff]
          %v403 = vld [vmem:[#allocation2 + $0x10] sm:$0xff]
          %v404 = vld [vmem:[#allocation2 + $0x18] sm:$0xff]
          %v405 = vld [vmem:[#allocation2 + $0x20] sm:$0xff]
          %v406 = vld [vmem:[#allocation2 + $0x28] sm:$0xff]
          %v407 = vld [vmem:[#allocation2 + $0x30] sm:$0xff]
          %v408 = vld [vmem:[#allocation2 + $0x38] sm:$0xff]
          %v409 = vld [vmem:[#allocation2 + $0x40] sm:$0xff]
          %v410 = vld [vmem:[#allocation2 + $0x48] sm:$0xff]
          %v411 = vld [vmem:[#allocation2 + $0x50] sm:$0xff]
          %v412 = vld [vmem:[#allocation2 + $0x58] sm:$0xff]
          %v413 = vld [vmem:[#allocation2 + $0x60] sm:$0xff]
          %v414 = vld [vmem:[#allocation2 + $0x68] sm:$0xff]
          %v415 = vld [vmem:[#allocation2 + $0x70] sm:$0xff]
          %v416 = vld [vmem:[#allocation2 + $0x78] sm:$0xff]
          %v417 = vadd.f32 %v401, %v298
          %v418 = vadd.f32 %v402, %v303
          %v419 = vadd.f32 %v403, %v308
          %v420 = vadd.f32 %v404, %v313
          %v421 = vadd.f32 %v405, %v318
          %v422 = vadd.f32 %v406, %v323
          %v423 = vadd.f32 %v407, %v328
          %v424 = vadd.f32 %v408, %v333
          %v425 = vadd.f32 %v409, %v338
          %v426 = vadd.f32 %v410, %v343
          %v427 = vadd.f32 %v411, %v348
          %v428 = vadd.f32 %v412, %v353
          %v429 = vadd.f32 %v413, %v358
          %v430 = vadd.f32 %v414, %v363
          %v431 = vadd.f32 %v415, %v368
          %v432 = vadd.f32 %v416, %v373
          %vm433 = vcmask 48128
          %434 = vst.msk [vmem:[#allocation2] sm:$0xff] %vm433, %v417
          %435 = vst.msk [vmem:[#allocation2 + $0x8] sm:$0xff] %vm433, %v418
          %436 = vst.msk [vmem:[#allocation2 + $0x10] sm:$0xff] %vm433, %v419
          %437 = vst.msk [vmem:[#allocation2 + $0x18] sm:$0xff] %vm433, %v420
          %438 = vst.msk [vmem:[#allocation2 + $0x20] sm:$0xff] %vm433, %v421
          %439 = vst.msk [vmem:[#allocation2 + $0x28] sm:$0xff] %vm433, %v422
          %440 = vst.msk [vmem:[#allocation2 + $0x30] sm:$0xff] %vm433, %v423
          %441 = vst.msk [vmem:[#allocation2 + $0x38] sm:$0xff] %vm433, %v424
          %442 = vst.msk [vmem:[#allocation2 + $0x40] sm:$0xff] %vm433, %v425
          %443 = vst.msk [vmem:[#allocation2 + $0x48] sm:$0xff] %vm433, %v426
          %444 = vst.msk [vmem:[#allocation2 + $0x50] sm:$0xff] %vm433, %v427
          %445 = vst.msk [vmem:[#allocation2 + $0x58] sm:$0xff] %vm433, %v428
          %446 = vst.msk [vmem:[#allocation2 + $0x60] sm:$0xff] %vm433, %v429
          %447 = vst.msk [vmem:[#allocation2 + $0x68] sm:$0xff] %vm433, %v430
          %448 = vst.msk [vmem:[#allocation2 + $0x70] sm:$0xff] %vm433, %v431
          %449 = vst.msk [vmem:[#allocation2 + $0x78] sm:$0xff] %vm433, %v432
        $region40: #{tpu_custom_call.1} parent=27 // pred_fallthru
          _
        %p450 = scmp.eq.s32.totalorder %s24, 1
        // Predicated region
        $region41: #{tpu_custom_call.1} parent=27 // pred_check
          %p451 = pneg %p450
        $region42: #{tpu_custom_call.1} parent=27 // pred_check_branch
          %453 = sbr.rel (%p451) target = $region44
        $region43: #{tpu_custom_call.1} parent=27 // pred_region
          %v454 = vld [vmem:[#allocation2] sm:$0xff]
          %v455 = vld [vmem:[#allocation2 + $0x8] sm:$0xff]
          %v456 = vld [vmem:[#allocation2 + $0x10] sm:$0xff]
          %v457 = vld [vmem:[#allocation2 + $0x18] sm:$0xff]
          %v458 = vld [vmem:[#allocation2 + $0x20] sm:$0xff]
          %v459 = vld [vmem:[#allocation2 + $0x28] sm:$0xff]
          %v460 = vld [vmem:[#allocation2 + $0x30] sm:$0xff]
          %v461 = vld [vmem:[#allocation2 + $0x38] sm:$0xff]
          %v462 = vld [vmem:[#allocation2 + $0x40] sm:$0xff]
          %v463 = vld [vmem:[#allocation2 + $0x48] sm:$0xff]
          %v464 = vld [vmem:[#allocation2 + $0x50] sm:$0xff]
          %v465 = vld [vmem:[#allocation2 + $0x58] sm:$0xff]
          %v466 = vld [vmem:[#allocation2 + $0x60] sm:$0xff]
          %v467 = vld [vmem:[#allocation2 + $0x68] sm:$0xff]
          %v468 = vld [vmem:[#allocation2 + $0x70] sm:$0xff]
          %v469 = vld [vmem:[#allocation2 + $0x78] sm:$0xff]
          %v470 = vmul.f32 %v454, %v454
          %v471 = vmul.f32 %v455, %v455
          %v472 = vmul.f32 %v456, %v456
          %v473 = vmul.f32 %v457, %v457
          %v474 = vmul.f32 %v458, %v458
          %v475 = vmul.f32 %v459, %v459
          %v476 = vmul.f32 %v460, %v460
          %v477 = vmul.f32 %v461, %v461
          %v478 = vmul.f32 %v462, %v462
          %v479 = vmul.f32 %v463, %v463
          %v480 = vmul.f32 %v464, %v464
          %v481 = vmul.f32 %v465, %v465
          %v482 = vmul.f32 %v466, %v466
          %v483 = vmul.f32 %v467, %v467
          %v484 = vmul.f32 %v468, %v468
          %v485 = vmul.f32 %v469, %v469
          %vm486 = vcmask 48128
          %v487 = vsel %vm486, %v470, 0.0
          %v488 = vsel %vm486, %v471, 0.0
          %v489 = vadd.f32 %v487, %v488
          %v490 = vsel %vm486, %v472, 0.0
          %v491 = vadd.f32 %v489, %v490
          %v492 = vsel %vm486, %v473, 0.0
          %v493 = vadd.f32 %v491, %v492
          %v494 = vsel %vm486, %v474, 0.0
          %v495 = vadd.f32 %v493, %v494
          %v496 = vsel %vm486, %v475, 0.0
          %v497 = vadd.f32 %v495, %v496
          %v498 = vsel %vm486, %v476, 0.0
          %v499 = vadd.f32 %v497, %v498
          %v500 = vsel %vm486, %v477, 0.0
          %v501 = vadd.f32 %v499, %v500
          %v502 = vsel %vm486, %v478, 0.0
          %v503 = vadd.f32 %v501, %v502
          %v504 = vsel %vm486, %v479, 0.0
          %v505 = vadd.f32 %v503, %v504
          %v506 = vsel %vm486, %v480, 0.0
          %v507 = vadd.f32 %v505, %v506
          %v508 = vsel %vm486, %v481, 0.0
          %v509 = vadd.f32 %v507, %v508
          %v510 = vsel %vm486, %v482, 0.0
          %v511 = vadd.f32 %v509, %v510
          %v512 = vsel %vm486, %v483, 0.0
          %v513 = vadd.f32 %v511, %v512
          %v514 = vsel %vm486, %v484, 0.0
          %v515 = vadd.f32 %v513, %v514
          %v516 = vsel %vm486, %v485, 0.0
          %v517 = vadd.f32 %v515, %v516
          %v518 = vrot.slane %v517, 4
          %v519 = vadd.f32 %v517, %v518
          %v520 = vrot.slane %v519, 2
          %v521 = vadd.f32 %v519, %v520
          %v522 = vrot.slane %v521, 1
          %v523 = vadd.f32 %v521, %v522
          %vm524 = vcmask 40960
          %525 = vst.msk [vmem:[%s192] sm:$0x1] %vm524, %v523
        $region44: #{tpu_custom_call.1} parent=27 // pred_fallthru
          _
        %s526 = sand.u32 %s93, 1
        %s527 = scalar_lea.sflag [#allocation5], %s526
        %s528 = sand.u32 %s93, 1
        %s529 = scalar_lea.vmem [#allocation6], %s528
        // Predicated region
        $region45: #{tpu_custom_call.1} parent=27 // pred_check
          %p530 = pneg %p103
        $region46: #{tpu_custom_call.1} parent=27 // pred_check_branch
          %532 = sbr.rel (%p530) target = $region48
        $region47: #{tpu_custom_call.1} parent=27 // pred_region
          %s534 = ssub.s32 16, 16
          %535 = vsyncadd %s527, %s534
          %s536 = smul.addr %s23, 16
          %s537 = scalar_lea.hbm %s2, %s536
          %s539 = sshll.u32 %s529, 4
          %s540 = int_to_ptr.vmem [resolvable:$true] %s539
          %542 = dma.vmem_to_hbm [thread:$0]  %s540, 16, %s537, %s527
        $region48: #{tpu_custom_call.1} parent=27 // pred_fallthru
          _
      $region28: #{tpu_custom_call.1} parent=5 // pred_fallthru
        _
      %p543 = scmp.le.s32.totalorder 2, %s14
      // Predicated region
      $region49: #{tpu_custom_call.1} parent=5 // pred_check
        %p544 = pneg %p543
      $region50: #{tpu_custom_call.1} parent=5 // pred_check_branch
        %546 = sbr.rel (%p544) target = $region52
      $region51: #{tpu_custom_call.1} parent=5 // pred_region
        %s547 = ssub.s32 %s14, 2
        // Predicated region
        $region53: #{tpu_custom_call.1} parent=51 // pred_check
          %p548 = pneg %p109
        $region54: #{tpu_custom_call.1} parent=51 // pred_check_branch
          %550 = sbr.rel (%p548) target = $region56
        $region55: #{tpu_custom_call.1} parent=51 // pred_region
          %s551 = sand.u32 %s94, 1
          %s552 = scalar_lea.sflag [#allocation5], %s551
          %s553 = sand.u32 %s94, 1
          %s554 = scalar_lea.vmem [#allocation6], %s553
          %555 = dma.done %s552, 16
        $region56: #{tpu_custom_call.1} parent=51 // pred_fallthru
          _
      $region52: #{tpu_custom_call.1} parent=5 // pred_fallthru
        _
    $region6: #{tpu_custom_call.1} parent=1 // loop_footer
      %s18 = sadd.s32 1, %s14
    $region7: #{tpu_custom_call.1} parent=1 // loop_footer_branch
      %13 = sbr.rel target = $region3
    $region8: #{tpu_custom_call.1} parent=1 // loop_exit
      _
    %556 = vsyncpa [#allocation4], 1
    %s557 = scalar_lea.sflag [#allocation4], 1
    %558 = vsyncpa %s557, 1
    %559 = vsyncpa [#allocation5], 1
    %s560 = scalar_lea.sflag [#allocation5], 1
    %561 = vsyncpa %s560, 1

</llo_original>
